<compile_context>
chip_gen: v7x
topology: tpu7x:2x2x1
jax: 0.10.0
libtpu: 0.0.40
codegen_flags: <defaults>
</compile_context>

<pallas_src>
import functools

import jax
import jax.numpy as jnp
from jax.experimental import pallas as pl
from jax.experimental.pallas import tpu as pltpu


def preference_kernel(x_ref, w_enc_ref, wc1_ref, pk_ref, out_ref):
    """Fused forward for both actions in one shot (single grid point).

    x_ref    : (2B, S+A)  rows [0,B) = [state|action1], rows [B,2B) = [state|action2]
    w_enc_ref: (S+A, 2H)  blockdiag(ws, wa)
    wc1_ref  : (2H, H)    comparator layer-1 weight
    pk_ref   : (4, 2H)    row0=[bs|ba], row1=[bc1|0], row2=[wc2|0], row3=[bc2,0...]
    out_ref  : (2B, 1)    scores: rows [0,B) = score1, rows [B,2B) = score2
    """
    H = wc1_ref.shape[1]

    # Encoders as one block-diagonal matmul + ReLU:
    #   relu(x @ blockdiag(ws, wa) + [bs|ba]) == concat([state_feat, act_feat]).
    feat = jnp.maximum(
        jnp.dot(x_ref[...], w_enc_ref[...], preferred_element_type=jnp.float32)
        + pk_ref[0:1, :],
        0.0)                                                           # (2B, 2H)

    # Comparator layer 1 (2H -> H) + ReLU.
    h = jnp.maximum(
        jnp.dot(feat, wc1_ref[...], preferred_element_type=jnp.float32)
        + pk_ref[1:2, 0:H],
        0.0)                                                           # (2B, H)

    # Comparator layer 2 (H -> 1) on the VPU/XLU: elementwise mul + lane reduce.
    wc2_row = pk_ref[2:3, 0:H]                                         # (1, H)
    bc2 = pk_ref[3:4, 0:1]                                             # (1, 1)
    out_ref[...] = jnp.sum(h * wc2_row, axis=-1, keepdims=True) + bc2  # (2B, 1)


def pack_params(p):
    """One-time kernel-layout re-pack of the PyTorch-style parameters.

    Done once at init (hoisted out of the per-call path).
    """
    S, H = p["ws"].shape
    A = p["wa"].shape[0]

    # Block-diagonal encoder weight: [ [ws, 0], [0, wa] ]  -> (S+A, 2H).
    w_enc = jnp.zeros((S + A, 2 * H), jnp.float32)
    w_enc = w_enc.at[:S, :H].set(p["ws"]).at[S:, H:].set(p["wa"])

    zeros_h = jnp.zeros((1, H), jnp.float32)
    row0 = jnp.concatenate([p["bs"], p["ba"]], axis=1)                 # [bs | ba]
    row1 = jnp.concatenate([p["bc1"], zeros_h], axis=1)                # [bc1 | 0]
    row2 = jnp.concatenate([p["wc2"].reshape(1, H), zeros_h], axis=1)  # [wc2 | 0]
    row3 = jnp.zeros((1, 2 * H), jnp.float32).at[0, 0].set(p["bc2"][0, 0])
    pk = jnp.concatenate([row0, row1, row2, row3], axis=0)             # (4, 2H)

    return dict(w_enc=w_enc, wc1=p["wc1"], pk=pk)


@jax.jit
def preference_model_forward(state, action1, action2, kparams):
    B, S = state.shape
    A = action1.shape[1]
    H = kparams["wc1"].shape[1]

    # Activation stacking (state repeated for both action halves) happens in
    # XLA so the kernel sees a single lane-contiguous activation input.
    x_stack = jnp.concatenate(
        [jnp.concatenate([state, state], axis=0),
         jnp.concatenate([action1, action2], axis=0)], axis=1)         # (2B, S+A)

    flops = (2 * (2 * B) * (S + A) * (2 * H)     # block-diag encoder matmul
             + 2 * (2 * B) * (2 * H) * H         # comparator layer 1
             + 2 * (2 * B) * H)                  # final mul + lane reduce
    bytes_accessed = 4 * (x_stack.size + kparams["w_enc"].size
                          + kparams["wc1"].size + kparams["pk"].size + 2 * B)

    vmem = pl.BlockSpec(memory_space=pltpu.MemorySpace.VMEM)

    out = pl.pallas_call(
        preference_kernel,
        out_shape=jax.ShapeDtypeStruct((2 * B, 1), jnp.float32),
        in_specs=[vmem, vmem, vmem, vmem],       # x_stack, w_enc, wc1, pk
        out_specs=vmem,
        cost_estimate=pl.CostEstimate(flops=flops, transcendentals=0,
                                      bytes_accessed=bytes_accessed),
    )(x_stack, kparams["w_enc"], kparams["wc1"], kparams["pk"])

    return out[:B], out[B:]


def init_params(key, state_dim, action_dim, hidden_dim):
    ks = jax.random.split(key, 4)

    def lin(k, fan_in, fan_out):
        # deterministic uniform init akin to nn.Linear's default
        bound = 1.0 / jnp.sqrt(fan_in)
        kw, kb = jax.random.split(k)
        w = jax.random.uniform(kw, (fan_in, fan_out), jnp.float32, -bound, bound)
        b = jax.random.uniform(kb, (1, fan_out), jnp.float32, -bound, bound)
        return w, b

    ws, bs = lin(ks[0], state_dim, hidden_dim)
    wa, ba = lin(ks[1], action_dim, hidden_dim)
    wc1, bc1 = lin(ks[2], 2 * hidden_dim, hidden_dim)
    wc2, bc2 = lin(ks[3], hidden_dim, 1)
    return dict(ws=ws, bs=bs, wa=wa, ba=ba, wc1=wc1, bc1=bc1, wc2=wc2, bc2=bc2)


def reference_forward(state, action1, action2, p):
    relu = lambda x: jnp.maximum(x, 0.0)
    sf = relu(state @ p["ws"] + p["bs"])
    a1f = relu(action1 @ p["wa"] + p["ba"])
    a2f = relu(action2 @ p["wa"] + p["ba"])
    in1 = jnp.concatenate([sf, a1f], axis=-1)
    in2 = jnp.concatenate([sf, a2f], axis=-1)
    h1 = relu(in1 @ p["wc1"] + p["bc1"])
    h2 = relu(in2 @ p["wc1"] + p["bc1"])
    return h1 @ p["wc2"] + p["bc2"], h2 @ p["wc2"] + p["bc2"]


if __name__ == "__main__":
    batch, state_dim, action_dim, hidden_dim = 8, 16, 8, 64

    key = jax.random.PRNGKey(0)
    k_state, k_a1, k_a2, k_params = jax.random.split(key, 4)

    state = jax.random.normal(k_state, (batch, state_dim), jnp.float32)
    action1 = jax.random.normal(k_a1, (batch, action_dim), jnp.float32)
    action2 = jax.random.normal(k_a2, (batch, action_dim), jnp.float32)

    params = init_params(k_params, state_dim, action_dim, hidden_dim)
    kparams = pack_params(params)   # one-time re-layout, hoisted out of forward

    score1, score2 = preference_model_forward(state, action1, action2, kparams)
    jax.block_until_ready((score1, score2))

    ref1, ref2 = reference_forward(state, action1, action2, params)
    assert score1.shape == (batch, 1) and score2.shape == (batch, 1)
    assert jnp.allclose(score1, ref1, atol=1e-5), "score1 mismatch"
    assert jnp.allclose(score2, ref2, atol=1e-5), "score2 mismatch"

    print("KERNEL_OK")
</pallas_src>

<mosaic_0001>
module attributes {stable_mosaic.version = 11 : i64} {
  func.func @preference_kernel(%arg0: memref<16x24xf32, #tpu.memory_space<vmem>>, %arg1: memref<24x128xf32, #tpu.memory_space<vmem>>, %arg2: memref<128x64xf32, #tpu.memory_space<vmem>>, %arg3: memref<4x128xf32, #tpu.memory_space<vmem>>, %arg4: memref<16x1xf32, #tpu.memory_space<vmem>>) attributes {dimension_semantics = [], scalar_prefetch = 0 : i64, scratch_operands = 0 : i64, tpu.core_type = #tpu.core_type<tc>} {
    %c0 = arith.constant 0 : index
    %c0_0 = arith.constant 0 : index
    %0 = vector.load %arg0[%c0, %c0_0] : memref<16x24xf32, #tpu.memory_space<vmem>>, vector<16x24xf32>
    %c0_1 = arith.constant 0 : index
    %c0_2 = arith.constant 0 : index
    %1 = vector.load %arg1[%c0_1, %c0_2] : memref<24x128xf32, #tpu.memory_space<vmem>>, vector<24x128xf32>
    %cst = arith.constant dense<0.000000e+00> : vector<16x128xf32>
    %2 = tpu.matmul %0, %1, %cst {dimension_numbers = #tpu.dot_dimension_numbers<[1], [0], [0], [1], [0, 0, 1, 1], [], []>} : vector<16x24xf32>, vector<24x128xf32>, vector<16x128xf32> -> vector<16x128xf32>
    %c0_3 = arith.constant 0 : index
    %c0_4 = arith.constant 0 : index
    %3 = vector.load %arg3[%c0_3, %c0_4] : memref<4x128xf32, #tpu.memory_space<vmem>>, vector<1x128xf32>
    %4 = vector.broadcast %3 : vector<1x128xf32> to vector<16x128xf32>
    %5 = arith.addf %2, %4 : vector<16x128xf32>
    %cst_5 = arith.constant 0.000000e+00 : f32
    %6 = vector.broadcast %cst_5 : f32 to vector<16x128xf32>
    %7 = arith.maximumf %5, %6 : vector<16x128xf32>
    %c0_6 = arith.constant 0 : index
    %c0_7 = arith.constant 0 : index
    %8 = vector.load %arg2[%c0_6, %c0_7] : memref<128x64xf32, #tpu.memory_space<vmem>>, vector<128x64xf32>
    %cst_8 = arith.constant dense<0.000000e+00> : vector<16x64xf32>
    %9 = tpu.matmul %7, %8, %cst_8 {dimension_numbers = #tpu.dot_dimension_numbers<[1], [0], [0], [1], [0, 0, 1, 1], [], []>} : vector<16x128xf32>, vector<128x64xf32>, vector<16x64xf32> -> vector<16x64xf32>
    %c1 = arith.constant 1 : index
    %c0_9 = arith.constant 0 : index
    %10 = vector.load %arg3[%c1, %c0_9] : memref<4x128xf32, #tpu.memory_space<vmem>>, vector<1x64xf32>
    %11 = vector.broadcast %10 : vector<1x64xf32> to vector<16x64xf32>
    %12 = arith.addf %9, %11 : vector<16x64xf32>
    %cst_10 = arith.constant 0.000000e+00 : f32
    %13 = vector.broadcast %cst_10 : f32 to vector<16x64xf32>
    %14 = arith.maximumf %12, %13 : vector<16x64xf32>
    %c2 = arith.constant 2 : index
    %c0_11 = arith.constant 0 : index
    %15 = vector.load %arg3[%c2, %c0_11] : memref<4x128xf32, #tpu.memory_space<vmem>>, vector<1x64xf32>
    %c3 = arith.constant 3 : index
    %c0_12 = arith.constant 0 : index
    %16 = vector.load %arg3[%c3, %c0_12] : memref<4x128xf32, #tpu.memory_space<vmem>>, vector<1x1xf32>
    %17 = vector.broadcast %15 : vector<1x64xf32> to vector<16x64xf32>
    %18 = arith.mulf %14, %17 : vector<16x64xf32>
    %cst_13 = arith.constant dense<0.000000e+00> : vector<16xf32>
    %19 = vector.multi_reduction <add>, %18, %cst_13 [1] : vector<16x64xf32> to vector<16xf32>
    %20 = vector.shape_cast %19 : vector<16xf32> to vector<16x1xf32>
    %21 = vector.broadcast %16 : vector<1x1xf32> to vector<16x1xf32>
    %22 = arith.addf %20, %21 : vector<16x1xf32>
    %c0_14 = arith.constant 0 : index
    %c0_15 = arith.constant 0 : index
    %23 = vector.load %arg4[%c0_14, %c0_15] : memref<16x1xf32, #tpu.memory_space<vmem>>, vector<16x1xf32>
    tpu.vector_store %arg4[%c0_14, %c0_15], %22 {strides = array<i32>} : memref<16x1xf32, #tpu.memory_space<vmem>>, vector<16x1xf32>,
    return
  }
}

</mosaic_0001>

<llo_original>
// kernel: preference_model_forward.1
$region0: #{preference_model_forward.1}
  #allocation0 [shape = 'u32[]', space=smem, size = 0x4, offset = 0x4, fixed_abs, tag = 'smem constant byte address 0x4 - core index']
  #allocation1 [shape = 'u32[144,128]{1,0:T(1,128)}', space=vmem, size = 0x12000, scoped, tag = 'internal scratch']
  %s0 = inlined_call_operand.vmem [shape: f32[16,24], index: 0, kind: input, shape index: {}]
  %s1 = inlined_call_operand.vmem [shape: f32[24,128], index: 1, kind: input, shape index: {}]
  %s2 = inlined_call_operand.vmem [shape: f32[128,64], index: 2, kind: input, shape index: {}]
  %s3 = inlined_call_operand.vmem [shape: f32[4,128], index: 3, kind: input, shape index: {}]
  %s4 = inlined_call_operand.vmem [shape: f32[16,1], index: 4, kind: output, shape index: {}]
  %s5 = sld [smem:[#allocation0]]
  $region26: #{preference_model_forward.1} parent=0
    _
  %s7 = ssub.s32 1, %s5
  %s8 = scalar_select 0, %s7, %s5
  // Predicated region
  $region2: #{preference_model_forward.1} parent=0 // pred_check
    _
  $region3: #{preference_model_forward.1} parent=0 // pred_check_branch
    %10 = sbr.rel (0) target = $region5
  $region4: #{preference_model_forward.1} parent=0 // pred_region
    _
  $region5: #{preference_model_forward.1} parent=0 // pred_fallthru
    _
  // Predicated region
  $region6: #{preference_model_forward.1} parent=0 // pred_check
    _
  $region7: #{preference_model_forward.1} parent=0 // pred_check_branch
    %12 = sbr.rel (0) target = $region9
  $region8: #{preference_model_forward.1} parent=0 // pred_region
    _
  $region9: #{preference_model_forward.1} parent=0 // pred_fallthru
    _
  // Predicated region
  $region10: #{preference_model_forward.1} parent=0 // pred_check
    _
  $region11: #{preference_model_forward.1} parent=0 // pred_check_branch
    %14 = sbr.rel (0) target = $region13
  $region12: #{preference_model_forward.1} parent=0 // pred_region
    _
  $region13: #{preference_model_forward.1} parent=0 // pred_fallthru
    _
  // Predicated region
  $region14: #{preference_model_forward.1} parent=0 // pred_check
    _
  $region15: #{preference_model_forward.1} parent=0 // pred_check_branch
    %16 = sbr.rel (0) target = $region17
  $region16: #{preference_model_forward.1} parent=0 // pred_region
    _
  $region17: #{preference_model_forward.1} parent=0 // pred_fallthru
    _
  %v17 = vld [vmem:[%s0] sm:$0xff]
  %v18 = vld [vmem:[%s0 + $0x8] sm:$0xff]
  %v19 = vld [vmem:[%s1] sm:$0xff]
  %v20 = vld [vmem:[%s1 + $0x8] sm:$0xff]
  %v21 = vld [vmem:[%s1 + $0x10] sm:$0xff]
  %v22 = vld [vmem:[%s3] sm:$0x1]
  %v23 = vlaneseq
  %v24 = vshrl.u32 %v23, 7
  %v25 = vsub.s32 0, %v24
  %v26 = vrot.slane %v22, %v25
  %vm27 = vcmask 195584
  %v29 = vsel %vm27, %v17, 0
  %v32 = vsel %vm27, %v18, 0
  %34 = vmatprep.subr.mxu0 0.0
  %35 = vmatpush1.msra.mxu0 %v19
  %36 = vmatprep.subr.mxu0 0.0
  %37 = vmatpush1.msra.mxu0 %v20
  %38 = vmatprep.subr.mxu0 0.0
  %39 = vmatpush1.msra.mxu0 %v21
  %40 = vmatprep.subr.mxu0 0.0
  %41 = vmatpush1.msra.mxu0 0.0
  %42 = vmatprep.subr.mxu0 0.0
  %43 = vmatpush1.msra.mxu0 0.0
  %44 = vmatprep.subr.mxu0 0.0
  %45 = vmatpush1.msra.mxu0 0.0
  %46 = vmatprep.subr.mxu0 0.0
  %47 = vmatpush1.msra.mxu0 0.0
  %48 = vmatprep.subr.mxu0 0.0
  %49 = vmatpush1.msra.mxu0 0.0
  %50 = vmatprep.subr.mxu0 0.0
  %51 = vmatpush1.msra.mxu0 0.0
  %52 = vmatprep.subr.mxu0 0.0
  %53 = vmatpush1.msra.mxu0 0.0
  %54 = vmatprep.subr.mxu0 0.0
  %55 = vmatpush1.msra.mxu0 0.0
  %56 = vmatprep.subr.mxu0 0.0
  %57 = vmatpush1.msra.mxu0 0.0
  %58 = vmatprep.subr.mxu0 0.0
  %59 = vmatpush1.msra.mxu0 0.0
  %60 = vmatprep.subr.mxu0 0.0
  %61 = vmatpush1.msra.mxu0 0.0
  %62 = vmatprep.subr.mxu0 0.0
  %63 = vmatpush1.msra.mxu0 0.0
  %64 = vmatprep.subr.mxu0 0.0
  %65 = vmatpush1.msra.mxu0 0.0
  %66 = vmatprep.subr.mxu0 0.0
  %67 = vmatpush1.msra.mxu0 0.0
  %68 = vmatprep.subr.mxu0 0.0
  %69 = vmatpush1.msra.mxu0 0.0
  %70 = vmatprep.subr.mxu0 0.0
  %71 = vmatpush1.msra.mxu0 0.0
  %72 = vmatprep.subr.mxu0 0.0
  %73 = vmatpush1.msra.mxu0 0.0
  %74 = vmatprep.subr.mxu0 0.0
  %75 = vmatpush1.msra.mxu0 0.0
  %76 = vmatprep.subr.mxu0 0.0
  %77 = vmatpush1.msra.mxu0 0.0
  %78 = vmatprep.subr.mxu0 0.0
  %79 = vmatpush1.msra.mxu0 0.0
  %80 = vmatprep.subr.mxu0 0.0
  %81 = vmatpush1.msra.mxu0 0.0
  %82 = vmatprep.subr.mxu0 0.0
  %83 = vmatpush1.msra.mxu0 0.0
  %84 = vmatprep.subr.mxu0 0.0
  %85 = vmatpush1.msra.mxu0 0.0
  %86 = vmatprep.subr.mxu0 0.0
  %87 = vmatpush1.msra.mxu0 0.0
  %88 = vmatprep.subr.mxu0 0.0
  %89 = vmatpush1.msra.mxu0 0.0
  %90 = vmatprep.subr.mxu0 0.0
  %91 = vmatpush1.msra.mxu0 0.0
  %92 = vmatprep.subr.mxu0 0.0
  %93 = vmatpush1.msra.mxu0 0.0
  %94 = vmatprep.subr.mxu0 0.0
  %95 = vmatpush1.msra.mxu0 0.0
  %96 = vmatprep.subr.mxu0 0.0
  %97 = vmatpush1.msra.mxu0 0.0
  %98 = vmatprep.mubr.f32.mxu0 0.0
  %99 = vmatmul.mubr.f32.gmra.mrb[0].mxu0 %v29
  %v100 = vpop.f32.mrb[0].mxu0
  %v101 = vadd.f32 %v26, %v100
  %v102 = vpop.f32.mrb[0].mxu0
  %103 = vmatprep.mubr.f32.mxu0 0.0
  %104 = vmatmul.mubr.f32.gmra.mrb[0].mxu0 %v32
  %v105 = vpop.f32.mrb[0].mxu0
  %v106 = vadd.f32 %v26, %v105
  %v107 = vpop.f32.mrb[0].mxu0
  %108 = vdwg.mxu0
  %v109 = vmax.f32 %v101, 0.0
  %v110 = vmax.f32 %v106, 0.0
  %v111 = vld [vmem:[%s2] sm:$0xff]
  %v112 = vld [vmem:[%s2 + $0x8] sm:$0xff]
  %v113 = vld [vmem:[%s2 + $0x10] sm:$0xff]
  %v114 = vld [vmem:[%s2 + $0x18] sm:$0xff]
  %v115 = vld [vmem:[%s2 + $0x20] sm:$0xff]
  %v116 = vld [vmem:[%s2 + $0x28] sm:$0xff]
  %v117 = vld [vmem:[%s2 + $0x30] sm:$0xff]
  %v118 = vld [vmem:[%s2 + $0x38] sm:$0xff]
  %v119 = vld [vmem:[%s2 + $0x40] sm:$0xff]
  %v120 = vld [vmem:[%s2 + $0x48] sm:$0xff]
  %v121 = vld [vmem:[%s2 + $0x50] sm:$0xff]
  %v122 = vld [vmem:[%s2 + $0x58] sm:$0xff]
  %v123 = vld [vmem:[%s2 + $0x60] sm:$0xff]
  %v124 = vld [vmem:[%s2 + $0x68] sm:$0xff]
  %v125 = vld [vmem:[%s2 + $0x70] sm:$0xff]
  %v126 = vld [vmem:[%s2 + $0x78] sm:$0xff]
  %v127 = vld [vmem:[%s3 + $0x1] sm:$0x1]
  %v128 = vlaneseq
  %v129 = vshrl.u32 %v128, 7
  %v130 = vsub.s32 0, %v129
  %v131 = vrot.slane %v127, %v130
  %132 = vmatprep.subr.mxu0 0.0
  %133 = vmatpush1.msra.mxu0 %v111
  %134 = vmatprep.subr.mxu0 0.0
  %135 = vmatpush1.msra.mxu0 %v112
  %136 = vmatprep.subr.mxu0 0.0
  %137 = vmatpush1.msra.mxu0 %v113
  %138 = vmatprep.subr.mxu0 0.0
  %139 = vmatpush1.msra.mxu0 %v114
  %140 = vmatprep.subr.mxu0 0.0
  %141 = vmatpush1.msra.mxu0 %v115
  %142 = vmatprep.subr.mxu0 0.0
  %143 = vmatpush1.msra.mxu0 %v116
  %144 = vmatprep.subr.mxu0 0.0
  %145 = vmatpush1.msra.mxu0 %v117
  %146 = vmatprep.subr.mxu0 0.0
  %147 = vmatpush1.msra.mxu0 %v118
  %148 = vmatprep.subr.mxu0 0.0
  %149 = vmatpush1.msra.mxu0 %v119
  %150 = vmatprep.subr.mxu0 0.0
  %151 = vmatpush1.msra.mxu0 %v120
  %152 = vmatprep.subr.mxu0 0.0
  %153 = vmatpush1.msra.mxu0 %v121
  %154 = vmatprep.subr.mxu0 0.0
  %155 = vmatpush1.msra.mxu0 %v122
  %156 = vmatprep.subr.mxu0 0.0
  %157 = vmatpush1.msra.mxu0 %v123
  %158 = vmatprep.subr.mxu0 0.0
  %159 = vmatpush1.msra.mxu0 %v124
  %160 = vmatprep.subr.mxu0 0.0
  %161 = vmatpush1.msra.mxu0 %v125
  %162 = vmatprep.subr.mxu0 0.0
  %163 = vmatpush1.msra.mxu0 %v126
  %164 = vmatprep.subr.mxu0 0.0
  %165 = vmatpush1.msra.mxu0 0.0
  %166 = vmatprep.subr.mxu0 0.0
  %167 = vmatpush1.msra.mxu0 0.0
  %168 = vmatprep.subr.mxu0 0.0
  %169 = vmatpush1.msra.mxu0 0.0
  %170 = vmatprep.subr.mxu0 0.0
  %171 = vmatpush1.msra.mxu0 0.0
  %172 = vmatprep.subr.mxu0 0.0
  %173 = vmatpush1.msra.mxu0 0.0
  %174 = vmatprep.subr.mxu0 0.0
  %175 = vmatpush1.msra.mxu0 0.0
  %176 = vmatprep.subr.mxu0 0.0
  %177 = vmatpush1.msra.mxu0 0.0
  %178 = vmatprep.subr.mxu0 0.0
  %179 = vmatpush1.msra.mxu0 0.0
  %180 = vmatprep.subr.mxu0 0.0
  %181 = vmatpush1.msra.mxu0 0.0
  %182 = vmatprep.subr.mxu0 0.0
  %183 = vmatpush1.msra.mxu0 0.0
  %184 = vmatprep.subr.mxu0 0.0
  %185 = vmatpush1.msra.mxu0 0.0
  %186 = vmatprep.subr.mxu0 0.0
  %187 = vmatpush1.msra.mxu0 0.0
  %188 = vmatprep.subr.mxu0 0.0
  %189 = vmatpush1.msra.mxu0 0.0
  %190 = vmatprep.subr.mxu0 0.0
  %191 = vmatpush1.msra.mxu0 0.0
  %192 = vmatprep.subr.mxu0 0.0
  %193 = vmatpush1.msra.mxu0 0.0
  %194 = vmatprep.subr.mxu0 0.0
  %195 = vmatpush1.msra.mxu0 0.0
  %196 = vmatprep.mubr.f32.mxu0 0.0
  %197 = vmatmul.mubr.f32.gmra.mrb[0].mxu0 %v109
  %v198 = vpop.f32.mrb[0].mxu0
  %v199 = vadd.f32 %v131, %v198
  %v200 = vpop.f32.mrb[0].mxu0
  %201 = vmatprep.mubr.f32.mxu0 0.0
  %202 = vmatmul.mubr.f32.gmra.mrb[0].mxu0 %v110
  %v203 = vpop.f32.mrb[0].mxu0
  %v204 = vadd.f32 %v131, %v203
  %v205 = vpop.f32.mrb[0].mxu0
  %206 = vdwg.mxu0
  %v207 = vmax.f32 %v199, 0.0
  %v208 = vmax.f32 %v204, 0.0
  %v209 = vld [vmem:[%s3 + $0x2] sm:$0x1]
  %v210 = vld [vmem:[%s3 + $0x3] sm:$0x1]
  %v211 = vlaneseq
  %v212 = vshrl.u32 %v211, 7
  %v213 = vsub.s32 0, %v212
  %v214 = vrot.slane %v209, %v213
  %v215 = vmul.f32 %v207, %v214
  %v216 = vmul.f32 %v208, %v214
  %vm217 = vcmask 523264
  %v218 = vsel %vm217, %v215, 0.0
  %219 = vadd.xlane.f32.xlu0 %v218
  %v220 = vpop.xlane.xlu0 %219
  %v221 = vsel %vm217, %v216, 0.0
  %222 = vadd.xlane.f32.xlu0 %v221
  %v223 = vpop.xlane.xlu0 %222
  %v224 = vlaneseq
  %v225 = vshrl.u32 %v224, 7
  %v226 = vsub.s32 0, %v225
  %v227 = vrot.slane %v210, %v226
  %v228 = vadd.f32 %v220, %v227
  %v229 = vadd.f32 %v223, %v227
  %vm230 = vcmask 7168
  %231 = vst.msk [vmem:[%s4] sm:$0xff] %vm230, %v228
  %232 = vst.msk [vmem:[%s4 + $0x8] sm:$0xff] %vm230, %v229
  // Predicated region
  $region18: #{preference_model_forward.1} parent=0 // pred_check
    _
  $region19: #{preference_model_forward.1} parent=0 // pred_check_branch
    %234 = sbr.rel (0) target = $region21
  $region20: #{preference_model_forward.1} parent=0 // pred_region
    _
  $region21: #{preference_model_forward.1} parent=0 // pred_fallthru
    _
  // Predicated region
  $region22: #{preference_model_forward.1} parent=0 // pred_check
    _
  $region23: #{preference_model_forward.1} parent=0 // pred_check_branch
    %236 = sbr.rel (0) target = $region25
  $region24: #{preference_model_forward.1} parent=0 // pred_region
    _
  $region25: #{preference_model_forward.1} parent=0 // pred_fallthru
    _

</llo_original>
